<compile_context>
chip_gen: v7x
topology: tpu7x:2x2x1
jax: 0.10.0
libtpu: 0.0.40
codegen_flags: <defaults>
</compile_context>

<pallas_src>
import functools

import jax
import jax.numpy as jnp
from jax.experimental import pallas as pl
from jax.experimental.pallas import tpu as pltpu

LANE = 128
SUBLANE = 8


def _round_up(x, m):
    return (x + m - 1) // m * m


def _cdiv(a, b):
    return -(-a // b)


def _pick_tile(batch, block_rows):
    """Row-tile size: large tiles to amortize per-step overhead, but always
    >= 2 (preferably an even number of) grid steps so v7x's two TensorCores
    split the batch evenly. Harmless no-op on v5e/v6e (single TC)."""
    if batch <= SUBLANE:
        return SUBLANE
    steps = max(2, _cdiv(batch, block_rows))
    if steps % 2:
        steps += 1
    return max(SUBLANE, _round_up(_cdiv(batch, steps), SUBLANE))


def prediction_kernel(x_ref, w1_ref, wm1_ref, wm2_ref, consts_ref, out_ref):
    H = w1_ref.shape[1]
    M = wm1_ref.shape[1]

    # Packed constants: row 0 = b1, row 1 = bm1, row 2 = bm2,
    #                   row 3 = w2 (as a row), row 4 lane 0 = b2.
    consts = consts_ref[...]
    b1 = consts[0:1, :H]
    bm1 = consts[1:2, :M]
    bm2 = consts[2:3, :H]
    w2 = consts[3:4, :H]
    b2 = consts[4:5, 0:1]

    # hid = relu(x @ W1 + b1)          (tm, H)  -- bf16 MXU, f32 accumulate
    x_bf = x_ref[...].astype(jnp.bfloat16)
    hid = jnp.dot(x_bf, w1_ref[...], preferred_element_type=jnp.float32) + b1
    hid = jnp.maximum(hid, 0.0)

    # mid = relu(hid @ Wm1 + bm1)      (tm, M)
    mid = jnp.dot(hid.astype(jnp.bfloat16), wm1_ref[...],
                  preferred_element_type=jnp.float32) + bm1
    mid = jnp.maximum(mid, 0.0)

    # mid = relu(mid @ Wm2 + bm2)      (tm, H)
    mid = jnp.dot(mid.astype(jnp.bfloat16), wm2_ref[...],
                  preferred_element_type=jnp.float32) + bm2
    mid = jnp.maximum(mid, 0.0)

    # residual connection
    hid = hid + mid

    # Final layer has a single output unit: VPU multiply + XLU lane reduction
    # instead of an MXU matmul with only one useful column.
    z = jnp.sum(hid * w2, axis=-1, keepdims=True) + b2          # (tm, 1) f32

    # Numerically stable sigmoid: exp(-|z|) never overflows; exact reciprocal
    # is essentially free on tm elements per tile.
    e = jnp.exp(-jnp.abs(z))
    sig_pos = 1.0 / (1.0 + e)
    out_ref[...] = jnp.where(z >= 0.0, sig_pos, 1.0 - sig_pos).astype(out_ref.dtype)


def init_params(key, in_feature=69, hid_units=32, contract=1):
    """Deterministic synthetic parameters (shapes match the PyTorch module)."""
    mid_units = hid_units // contract
    ks = jax.random.split(key, 8)

    def lin(kw, kb, fan_in, fan_out):
        # PyTorch nn.Linear default init: U(-1/sqrt(fan_in), 1/sqrt(fan_in))
        bound = 1.0 / jnp.sqrt(jnp.float32(fan_in))
        w = jax.random.uniform(kw, (fan_in, fan_out), jnp.float32, -bound, bound)
        b = jax.random.uniform(kb, (1, fan_out), jnp.float32, -bound, bound)
        return w, b

    w1, b1 = lin(ks[0], ks[1], in_feature, hid_units)     # out_mlp1
    wm1, bm1 = lin(ks[2], ks[3], hid_units, mid_units)    # mid_mlp1
    wm2, bm2 = lin(ks[4], ks[5], mid_units, hid_units)    # mid_mlp2
    w2, b2 = lin(ks[6], ks[7], hid_units, 1)              # out_mlp2
    return {"w1": w1, "b1": b1, "wm1": wm1, "bm1": bm1,
            "wm2": wm2, "bm2": bm2, "w2": w2, "b2": b2}


def pack_params(p):
    """One-time repacking of the math params into the kernel layout:
       - matmul weights cast to bf16 (MXU is bf16-native on v5e/v6e/v7x),
       - the five tiny vectors/scalars packed into one (8, lane-padded) f32
         block so they arrive as a single VMEM-resident input."""
    H = p["w1"].shape[1]
    M = p["wm1"].shape[1]
    lanes = _round_up(max(H, M, 1), LANE)
    consts = jnp.zeros((SUBLANE, lanes), jnp.float32)
    consts = consts.at[0, :H].set(p["b1"].reshape(H))
    consts = consts.at[1, :M].set(p["bm1"].reshape(M))
    consts = consts.at[2, :H].set(p["bm2"].reshape(H))
    consts = consts.at[3, :H].set(p["w2"].reshape(H))
    consts = consts.at[4, 0].set(p["b2"].reshape(()))
    return {"w1": p["w1"].astype(jnp.bfloat16),
            "wm1": p["wm1"].astype(jnp.bfloat16),
            "wm2": p["wm2"].astype(jnp.bfloat16),
            "consts": consts}


@functools.partial(jax.jit, static_argnames=("block_rows",))
def prediction_forward(features, packed, *, block_rows=2048):
    """features: [B, in_feature] f32 (or bf16). Returns [B, 1] f32."""
    B, in_f = features.shape
    H = packed["w1"].shape[1]
    M = packed["wm1"].shape[1]
    clanes = packed["consts"].shape[1]

    tm = _pick_tile(B, block_rows)
    steps = _cdiv(B, tm)

    const = lambda i: (0, 0)   # weights/consts: resident in VMEM across steps
    row = lambda i: (i, 0)     # activations/outputs: stream over the batch

    itemsize = jnp.dtype(features.dtype).itemsize
    flops = 2 * B * (in_f * H + H * M + M * H + H)
    bytes_accessed = (B * in_f * itemsize + B * 4
                      + 2 * (in_f * H + H * M + M * H) + 4 * SUBLANE * clanes)

    out = pl.pallas_call(
        prediction_kernel,
        out_shape=jax.ShapeDtypeStruct((B, 1), jnp.float32),
        grid=(steps,),
        in_specs=[
            pl.BlockSpec((tm, in_f), row),        # x (streamed; tail block partial)
            pl.BlockSpec((in_f, H), const),       # w1  (bf16, resident)
            pl.BlockSpec((H, M), const),          # wm1 (bf16, resident)
            pl.BlockSpec((M, H), const),          # wm2 (bf16, resident)
            pl.BlockSpec((SUBLANE, clanes), const),  # packed b1/bm1/bm2/w2/b2
        ],
        out_specs=pl.BlockSpec((tm, 1), row),
        compiler_params=pltpu.CompilerParams(
            dimension_semantics=("parallel",)),   # v7x: shard batch across 2 TCs
        cost_estimate=pl.CostEstimate(
            flops=flops, transcendentals=B, bytes_accessed=bytes_accessed),
    )(features, packed["w1"], packed["wm1"], packed["wm2"], packed["consts"])

    return out


def prediction_reference(features, p):
    """Plain-JAX f32 reference of the PyTorch forward (mid_layers=True, res_con=True)."""
    hid = jnp.maximum(features @ p["w1"] + p["b1"], 0.0)
    mid = jnp.maximum(hid @ p["wm1"] + p["bm1"], 0.0)
    mid = jnp.maximum(mid @ p["wm2"] + p["bm2"], 0.0)
    hid = hid + mid
    return jax.nn.sigmoid(hid @ p["w2"] + p["b2"])


def prediction_reference_bf16(features, p):
    """Reference that mimics the kernel's bf16-MXU / f32-accumulate numerics."""
    bf, f32 = jnp.bfloat16, jnp.float32
    hid = jnp.maximum(jnp.dot(features.astype(bf), p["w1"].astype(bf),
                              preferred_element_type=f32) + p["b1"], 0.0)
    mid = jnp.maximum(jnp.dot(hid.astype(bf), p["wm1"].astype(bf),
                              preferred_element_type=f32) + p["bm1"], 0.0)
    mid = jnp.maximum(jnp.dot(mid.astype(bf), p["wm2"].astype(bf),
                              preferred_element_type=f32) + p["bm2"], 0.0)
    hid = hid + mid
    return jax.nn.sigmoid(hid @ p["w2"] + p["b2"])


if __name__ == "__main__":
    key = jax.random.PRNGKey(0)
    k_params, k_x1, k_x2 = jax.random.split(key, 3)

    IN_FEATURE, HID_UNITS = 69, 32
    params = init_params(k_params, in_feature=IN_FEATURE, hid_units=HID_UNITS)
    packed = pack_params(params)

    # bf16 matmul inputs (f32 accumulate) introduce ~1e-2-level pre-sigmoid
    # error vs. the pure-f32 reference; sigmoid is exact (no approx rcp).
    ATOL_F32 = 2e-2     # vs. exact f32 math
    ATOL_BF16 = 1e-3    # vs. a reference using the same bf16-MXU numerics

    # Small-shape check (single grid step, single 8-row tile).
    B_small = 8
    x_small = jax.random.normal(k_x1, (B_small, IN_FEATURE), jnp.float32)
    out_small = jax.block_until_ready(prediction_forward(x_small, packed))
    assert out_small.shape == (B_small, 1)
    assert jnp.allclose(out_small, prediction_reference(x_small, params),
                        atol=ATOL_F32), "small-batch mismatch vs f32 reference"
    assert jnp.allclose(out_small, prediction_reference_bf16(x_small, params),
                        atol=ATOL_BF16), "small-batch mismatch vs bf16 reference"

    # Larger batch: multi-step grid, partial tail block, resident weights.
    B_big = 1000
    x_big = jax.random.normal(k_x2, (B_big, IN_FEATURE), jnp.float32)
    out_big = jax.block_until_ready(prediction_forward(x_big, packed))
    assert out_big.shape == (B_big, 1)
    assert jnp.allclose(out_big, prediction_reference(x_big, params),
                        atol=ATOL_F32), "large-batch mismatch vs f32 reference"
    assert jnp.allclose(out_big, prediction_reference_bf16(x_big, params),
                        atol=ATOL_BF16), "large-batch mismatch vs bf16 reference"

    print("KERNEL_OK")
</pallas_src>

<mosaic_0001>
module attributes {stable_mosaic.version = 11 : i64} {
  func.func @prediction_kernel(%arg0: i32, %arg1: memref<8x69xf32, #tpu.memory_space<vmem>>, %arg2: memref<69x32xbf16, #tpu.memory_space<vmem>>, %arg3: memref<32x32xbf16, #tpu.memory_space<vmem>>, %arg4: memref<32x32xbf16, #tpu.memory_space<vmem>>, %arg5: memref<8x128xf32, #tpu.memory_space<vmem>>, %arg6: memref<8x1xf32, #tpu.memory_space<vmem>>) attributes {dimension_semantics = [#tpu.dimension_semantics<parallel>], iteration_bounds = array<i64: 1>, scalar_prefetch = 0 : i64, scratch_operands = 0 : i64, tpu.core_type = #tpu.core_type<tc>, window_params = [{transform_indices = @transform_0, window_bounds = array<i64: 8, 69>}, {pipeline_mode = #tpu.pipeline_mode<synchronous>, transform_indices = @transform_1, window_bounds = array<i64: 69, 32>}, {pipeline_mode = #tpu.pipeline_mode<synchronous>, transform_indices = @transform_2, window_bounds = array<i64: 32, 32>}, {pipeline_mode = #tpu.pipeline_mode<synchronous>, transform_indices = @transform_3, window_bounds = array<i64: 32, 32>}, {pipeline_mode = #tpu.pipeline_mode<synchronous>, transform_indices = @transform_4, window_bounds = array<i64: 8, 128>}, {transform_indices = @transform_5, window_bounds = array<i64: 8, 1>}]} {
    %c0 = arith.constant 0 : index
    %c0_0 = arith.constant 0 : index
    %0 = vector.load %arg5[%c0, %c0_0] : memref<8x128xf32, #tpu.memory_space<vmem>>, vector<8x128xf32>
    %1 = vector.extract_strided_slice %0 {offsets = [0, 0], sizes = [1, 32], strides = [1, 1]} : vector<8x128xf32> to vector<1x32xf32>
    %2 = vector.extract_strided_slice %0 {offsets = [1, 0], sizes = [1, 32], strides = [1, 1]} : vector<8x128xf32> to vector<1x32xf32>
    %3 = vector.extract_strided_slice %0 {offsets = [2, 0], sizes = [1, 32], strides = [1, 1]} : vector<8x128xf32> to vector<1x32xf32>
    %4 = vector.extract_strided_slice %0 {offsets = [3, 0], sizes = [1, 32], strides = [1, 1]} : vector<8x128xf32> to vector<1x32xf32>
    %5 = vector.extract_strided_slice %0 {offsets = [4, 0], sizes = [1, 1], strides = [1, 1]} : vector<8x128xf32> to vector<1x1xf32>
    %c0_1 = arith.constant 0 : index
    %c0_2 = arith.constant 0 : index
    %6 = vector.load %arg1[%c0_1, %c0_2] : memref<8x69xf32, #tpu.memory_space<vmem>>, vector<8x69xf32>
    %7 = arith.truncf %6 : vector<8x69xf32> to vector<8x69xbf16>
    %c0_3 = arith.constant 0 : index
    %c0_4 = arith.constant 0 : index
    %8 = vector.load %arg2[%c0_3, %c0_4] : memref<69x32xbf16, #tpu.memory_space<vmem>>, vector<69x32xbf16>
    %cst = arith.constant dense<0.000000e+00> : vector<8x32xf32>
    %9 = tpu.matmul %7, %8, %cst {dimension_numbers = #tpu.dot_dimension_numbers<[1], [0], [0], [1], [0, 0, 1, 1], [], []>} : vector<8x69xbf16>, vector<69x32xbf16>, vector<8x32xf32> -> vector<8x32xf32>
    %10 = vector.broadcast %1 : vector<1x32xf32> to vector<8x32xf32>
    %11 = arith.addf %9, %10 : vector<8x32xf32>
    %cst_5 = arith.constant 0.000000e+00 : f32
    %12 = vector.broadcast %cst_5 : f32 to vector<8x32xf32>
    %13 = arith.maximumf %11, %12 : vector<8x32xf32>
    %14 = arith.truncf %13 : vector<8x32xf32> to vector<8x32xbf16>
    %c0_6 = arith.constant 0 : index
    %c0_7 = arith.constant 0 : index
    %15 = vector.load %arg3[%c0_6, %c0_7] : memref<32x32xbf16, #tpu.memory_space<vmem>>, vector<32x32xbf16>
    %cst_8 = arith.constant dense<0.000000e+00> : vector<8x32xf32>
    %16 = tpu.matmul %14, %15, %cst_8 {dimension_numbers = #tpu.dot_dimension_numbers<[1], [0], [0], [1], [0, 0, 1, 1], [], []>} : vector<8x32xbf16>, vector<32x32xbf16>, vector<8x32xf32> -> vector<8x32xf32>
    %17 = vector.broadcast %2 : vector<1x32xf32> to vector<8x32xf32>
    %18 = arith.addf %16, %17 : vector<8x32xf32>
    %cst_9 = arith.constant 0.000000e+00 : f32
    %19 = vector.broadcast %cst_9 : f32 to vector<8x32xf32>
    %20 = arith.maximumf %18, %19 : vector<8x32xf32>
    %21 = arith.truncf %20 : vector<8x32xf32> to vector<8x32xbf16>
    %c0_10 = arith.constant 0 : index
    %c0_11 = arith.constant 0 : index
    %22 = vector.load %arg4[%c0_10, %c0_11] : memref<32x32xbf16, #tpu.memory_space<vmem>>, vector<32x32xbf16>
    %cst_12 = arith.constant dense<0.000000e+00> : vector<8x32xf32>
    %23 = tpu.matmul %21, %22, %cst_12 {dimension_numbers = #tpu.dot_dimension_numbers<[1], [0], [0], [1], [0, 0, 1, 1], [], []>} : vector<8x32xbf16>, vector<32x32xbf16>, vector<8x32xf32> -> vector<8x32xf32>
    %24 = vector.broadcast %3 : vector<1x32xf32> to vector<8x32xf32>
    %25 = arith.addf %23, %24 : vector<8x32xf32>
    %cst_13 = arith.constant 0.000000e+00 : f32
    %26 = vector.broadcast %cst_13 : f32 to vector<8x32xf32>
    %27 = arith.maximumf %25, %26 : vector<8x32xf32>
    %28 = arith.addf %13, %27 : vector<8x32xf32>
    %29 = vector.broadcast %4 : vector<1x32xf32> to vector<8x32xf32>
    %30 = arith.mulf %28, %29 : vector<8x32xf32>
    %cst_14 = arith.constant dense<0.000000e+00> : vector<8xf32>
    %31 = vector.multi_reduction <add>, %30, %cst_14 [1] : vector<8x32xf32> to vector<8xf32>
    %32 = vector.shape_cast %31 : vector<8xf32> to vector<8x1xf32>
    %33 = vector.broadcast %5 : vector<1x1xf32> to vector<8x1xf32>
    %34 = arith.addf %32, %33 : vector<8x1xf32>
    %35 = math.absf %34 : vector<8x1xf32>
    %cst_15 = arith.constant 0.000000e+00 : f32
    %36 = vector.broadcast %cst_15 : f32 to vector<8x1xf32>
    %37 = arith.subf %36, %35 : vector<8x1xf32>
    %38 = math.exp %37 : vector<8x1xf32>
    %cst_16 = arith.constant 1.000000e+00 : f32
    %39 = vector.broadcast %cst_16 : f32 to vector<8x1xf32>
    %40 = arith.addf %39, %38 : vector<8x1xf32>
    %cst_17 = arith.constant 1.000000e+00 : f32
    %41 = vector.broadcast %cst_17 : f32 to vector<8x1xf32>
    %42 = arith.divf %41, %40 : vector<8x1xf32>
    %cst_18 = arith.constant 0.000000e+00 : f32
    %43 = vector.broadcast %cst_18 : f32 to vector<8x1xf32>
    %44 = arith.cmpf oge, %34, %43 : vector<8x1xf32>
    %cst_19 = arith.constant 1.000000e+00 : f32
    %45 = vector.broadcast %cst_19 : f32 to vector<8x1xf32>
    %46 = arith.subf %45, %42 : vector<8x1xf32>
    %47 = arith.select %44, %42, %46 : vector<8x1xi1>, vector<8x1xf32>
    %c0_20 = arith.constant 0 : index
    %c0_21 = arith.constant 0 : index
    %48 = vector.load %arg6[%c0_20, %c0_21] : memref<8x1xf32, #tpu.memory_space<vmem>>, vector<8x1xf32>
    tpu.vector_store %arg6[%c0_20, %c0_21], %47 {strides = array<i32>} : memref<8x1xf32, #tpu.memory_space<vmem>>, vector<8x1xf32>,
    return
  }
  func.func @transform_0(%arg0: i32) -> (i32, i32) {
    %c0_i32 = arith.constant 0 : i32
    %c0_i32_0 = arith.constant 0 : i32
    return %arg0, %c0_i32 : i32, i32
  }
  func.func @transform_1(%arg0: i32) -> (i32, i32) {
    %c0_i32 = arith.constant 0 : i32
    %c0_i32_0 = arith.constant 0 : i32
    %c0_i32_1 = arith.constant 0 : i32
    return %c0_i32, %c0_i32_0 : i32, i32
  }
  func.func @transform_2(%arg0: i32) -> (i32, i32) {
    %c0_i32 = arith.constant 0 : i32
    %c0_i32_0 = arith.constant 0 : i32
    %c0_i32_1 = arith.constant 0 : i32
    return %c0_i32, %c0_i32_0 : i32, i32
  }
  func.func @transform_3(%arg0: i32) -> (i32, i32) {
    %c0_i32 = arith.constant 0 : i32
    %c0_i32_0 = arith.constant 0 : i32
    %c0_i32_1 = arith.constant 0 : i32
    return %c0_i32, %c0_i32_0 : i32, i32
  }
  func.func @transform_4(%arg0: i32) -> (i32, i32) {
    %c0_i32 = arith.constant 0 : i32
    %c0_i32_0 = arith.constant 0 : i32
    %c0_i32_1 = arith.constant 0 : i32
    return %c0_i32, %c0_i32_0 : i32, i32
  }
  func.func @transform_5(%arg0: i32) -> (i32, i32) {
    %c0_i32 = arith.constant 0 : i32
    %c0_i32_0 = arith.constant 0 : i32
    return %arg0, %c0_i32 : i32, i32
  }
}

</mosaic_0001>

<llo_original>
// kernel: prediction_forward.1
$region0: #{prediction_forward.1}
  #allocation0 [shape = 'u32[]', space=smem, size = 0x4, offset = 0x4, fixed_abs, tag = 'smem constant byte address 0x4 - core index']
  #allocation1 [shape = 'u32[144,128]{1,0:T(1,128)}', space=vmem, size = 0x12000, scoped, tag = 'internal scratch']
  %s0 = inlined_call_operand.vmem [shape: f32[8,69], index: 0, kind: input, shape index: {}]
  %s1 = inlined_call_operand.vmem [shape: bf16[69,32], index: 1, kind: input, shape index: {}]
  %s2 = inlined_call_operand.vmem [shape: bf16[32,32], index: 2, kind: input, shape index: {}]
  %s3 = inlined_call_operand.vmem [shape: bf16[32,32], index: 3, kind: input, shape index: {}]
  %s4 = inlined_call_operand.vmem [shape: f32[8,128], index: 4, kind: input, shape index: {}]
  %s5 = inlined_call_operand.vmem [shape: f32[8,1], index: 5, kind: output, shape index: {}]
  %s6 = sld [smem:[#allocation0]]
  $region30: #{prediction_forward.1} parent=0
    _
  %s8 = ssub.s32 1, %s6
  %s9 = scalar_select 0, %s8, %s6
  // Predicated region
  $region2: #{prediction_forward.1} parent=0 // pred_check
    _
  $region3: #{prediction_forward.1} parent=0 // pred_check_branch
    %11 = sbr.rel (0) target = $region5
  $region4: #{prediction_forward.1} parent=0 // pred_region
    _
  $region5: #{prediction_forward.1} parent=0 // pred_fallthru
    _
  // Predicated region
  $region6: #{prediction_forward.1} parent=0 // pred_check
    _
  $region7: #{prediction_forward.1} parent=0 // pred_check_branch
    %13 = sbr.rel (0) target = $region9
  $region8: #{prediction_forward.1} parent=0 // pred_region
    _
  $region9: #{prediction_forward.1} parent=0 // pred_fallthru
    _
  // Predicated region
  $region10: #{prediction_forward.1} parent=0 // pred_check
    _
  $region11: #{prediction_forward.1} parent=0 // pred_check_branch
    %15 = sbr.rel (0) target = $region13
  $region12: #{prediction_forward.1} parent=0 // pred_region
    _
  $region13: #{prediction_forward.1} parent=0 // pred_fallthru
    _
  // Predicated region
  $region14: #{prediction_forward.1} parent=0 // pred_check
    _
  $region15: #{prediction_forward.1} parent=0 // pred_check_branch
    %17 = sbr.rel (0) target = $region17
  $region16: #{prediction_forward.1} parent=0 // pred_region
    _
  $region17: #{prediction_forward.1} parent=0 // pred_fallthru
    _
  // Predicated region
  $region18: #{prediction_forward.1} parent=0 // pred_check
    _
  $region19: #{prediction_forward.1} parent=0 // pred_check_branch
    %19 = sbr.rel (0) target = $region21
  $region20: #{prediction_forward.1} parent=0 // pred_region
    _
  $region21: #{prediction_forward.1} parent=0 // pred_fallthru
    _
  %v21 = vld [vmem:[%s4] sm:$0xff]
  %v22 = vld [vmem:[%s0] sm:$0xff]
  %v23 = vpack.c.bf16 %v22, %v22
  %v24 = vld [vmem:[%s1] sm:$0xf]
  %v25 = vld [vmem:[%s1 + $0x4] sm:$0xf]
  %v26 = vld [vmem:[%s1 + $0x8] sm:$0xf]
  %v27 = vld [vmem:[%s1 + $0xc] sm:$0xf]
  %v28 = vld [vmem:[%s1 + $0x10] sm:$0xf]
  %v29 = vld [vmem:[%s1 + $0x14] sm:$0xf]
  %v30 = vld [vmem:[%s1 + $0x18] sm:$0xf]
  %v31 = vld [vmem:[%s1 + $0x1c] sm:$0xf]
  %v32 = vld [vmem:[%s1 + $0x20] sm:$0x7]
  %v33 = vlaneseq
  %v34 = vshrl.u32 %v33, 7
  %v35 = vsub.s32 0, %v34
  %v36 = vrot.slane %v21, %v35
  %v46 = vunpack.c.l.b16 %v24
  %v47 = vunpack.c.l.b16 %v25
  %v48 = vunpack.c.l.b16 %v26
  %v49 = vunpack.c.l.b16 %v27
  %v50 = vunpack.c.l.b16 %v28
  %v51 = vunpack.c.l.b16 %v29
  %v52 = vunpack.c.l.b16 %v30
  %v53 = vunpack.c.l.b16 %v31
  %v54 = vunpack.c.l.b16 %v32
  %v55 = vpack.c.b16 %v47, %v46
  %v56 = vpack.c.b16 %v49, %v48
  %v57 = vpack.c.b16 %v51, %v50
  %v58 = vpack.c.b16 %v53, %v52
  %v59 = vpack.c.b16 %v54, %v54
  %vm64 = vcmask 564224
  %v66 = vsel %vm64, %v23, 0
  %vm68 = vcmask 1041408
  %vm69 = vcmask 1042432
  %v70 = vsel %vm68, 4294967295, 65535
  %v71 = vsel %vm69, %v70, 0
  %v73 = vand.u32 %v59, %v71
  %75 = vmatprep.subr.bf16.mxu0 0
  %76 = vmatpush1.bf16.msra.mxu0 %v55
  %77 = vmatprep.subr.bf16.mxu0 0
  %78 = vmatpush1.bf16.msra.mxu0 %v56
  %79 = vmatprep.subr.bf16.mxu0 0
  %80 = vmatpush1.bf16.msra.mxu0 %v57
  %81 = vmatprep.subr.bf16.mxu0 0
  %82 = vmatpush1.bf16.msra.mxu0 %v58
  %83 = vmatprep.subr.bf16.mxu0 0
  %84 = vmatpush1.bf16.msra.mxu0 %v73
  %85 = vmatprep.subr.bf16.mxu0 0
  %86 = vmatpush1.bf16.msra.mxu0 0
  %87 = vmatprep.subr.bf16.mxu0 0
  %88 = vmatpush1.bf16.msra.mxu0 0
  %89 = vmatprep.subr.bf16.mxu0 0
  %90 = vmatpush1.bf16.msra.mxu0 0
  %91 = vmatprep.subr.bf16.mxu0 0
  %92 = vmatpush1.bf16.msra.mxu0 0
  %93 = vmatprep.subr.bf16.mxu0 0
  %94 = vmatpush1.bf16.msra.mxu0 0
  %95 = vmatprep.subr.bf16.mxu0 0
  %96 = vmatpush1.bf16.msra.mxu0 0
  %97 = vmatprep.subr.bf16.mxu0 0
  %98 = vmatpush1.bf16.msra.mxu0 0
  %99 = vmatprep.subr.bf16.mxu0 0
  %100 = vmatpush1.bf16.msra.mxu0 0
  %101 = vmatprep.subr.bf16.mxu0 0
  %102 = vmatpush1.bf16.msra.mxu0 0
  %103 = vmatprep.subr.bf16.mxu0 0
  %104 = vmatpush1.bf16.msra.mxu0 0
  %105 = vmatprep.subr.bf16.mxu0 0
  %106 = vmatpush1.bf16.msra.mxu0 0
  %107 = vmatprep.mubr.bf16.mxu0 0
  %108 = vmatmul.mubr.bf16.gmra.mrb[0].mxu0 %v66
  %v109 = vpop.f32.mrb[0].mxu0
  %v110 = vadd.f32 %v36, %v109
  %v111 = vpop.f32.mrb[0].mxu0
  %v112 = vpop.f32.mrb[0].mxu0
  %v113 = vpop.f32.mrb[0].mxu0
  %114 = vdwg.mxu0
  %v115 = vmax.f32 %v110, 0.0
  %v116 = vpack.c.bf16 %v115, %v115
  %v117 = vld [vmem:[%s2] sm:$0xf]
  %v118 = vld [vmem:[%s2 + $0x4] sm:$0xf]
  %v119 = vld [vmem:[%s2 + $0x8] sm:$0xf]
  %v120 = vld [vmem:[%s2 + $0xc] sm:$0xf]
  %v121 = vlaneseq
  %v122 = vshrl.u32 %v121, 7
  %v123 = vsub.s32 1, %v122
  %v124 = vrot.slane %v21, %v123
  %v129 = vunpack.c.l.b16 %v117
  %v130 = vunpack.c.l.b16 %v118
  %v131 = vunpack.c.l.b16 %v119
  %v132 = vunpack.c.l.b16 %v120
  %v133 = vpack.c.b16 %v130, %v129
  %v134 = vpack.c.b16 %v132, %v131
  %vm137 = vcmask 261120
  %v139 = vsel %vm137, %v116, 0
  %141 = vmatprep.subr.bf16.mxu0 0
  %142 = vmatpush1.bf16.msra.mxu0 %v133
  %143 = vmatprep.subr.bf16.mxu0 0
  %144 = vmatpush1.bf16.msra.mxu0 %v134
  %145 = vmatprep.subr.bf16.mxu0 0
  %146 = vmatpush1.bf16.msra.mxu0 0
  %147 = vmatprep.subr.bf16.mxu0 0
  %148 = vmatpush1.bf16.msra.mxu0 0
  %149 = vmatprep.subr.bf16.mxu0 0
  %150 = vmatpush1.bf16.msra.mxu0 0
  %151 = vmatprep.subr.bf16.mxu0 0
  %152 = vmatpush1.bf16.msra.mxu0 0
  %153 = vmatprep.subr.bf16.mxu0 0
  %154 = vmatpush1.bf16.msra.mxu0 0
  %155 = vmatprep.subr.bf16.mxu0 0
  %156 = vmatpush1.bf16.msra.mxu0 0
  %157 = vmatprep.subr.bf16.mxu0 0
  %158 = vmatpush1.bf16.msra.mxu0 0
  %159 = vmatprep.subr.bf16.mxu0 0
  %160 = vmatpush1.bf16.msra.mxu0 0
  %161 = vmatprep.subr.bf16.mxu0 0
  %162 = vmatpush1.bf16.msra.mxu0 0
  %163 = vmatprep.subr.bf16.mxu0 0
  %164 = vmatpush1.bf16.msra.mxu0 0
  %165 = vmatprep.subr.bf16.mxu0 0
  %166 = vmatpush1.bf16.msra.mxu0 0
  %167 = vmatprep.subr.bf16.mxu0 0
  %168 = vmatpush1.bf16.msra.mxu0 0
  %169 = vmatprep.subr.bf16.mxu0 0
  %170 = vmatpush1.bf16.msra.mxu0 0
  %171 = vmatprep.subr.bf16.mxu0 0
  %172 = vmatpush1.bf16.msra.mxu0 0
  %173 = vmatprep.mubr.bf16.mxu0 0
  %174 = vmatmul.mubr.bf16.gmra.mrb[0].mxu0 %v139
  %v175 = vpop.f32.mrb[0].mxu0
  %v176 = vadd.f32 %v124, %v175
  %v177 = vpop.f32.mrb[0].mxu0
  %v178 = vpop.f32.mrb[0].mxu0
  %v179 = vpop.f32.mrb[0].mxu0
  %180 = vdwg.mxu0
  %v181 = vmax.f32 %v176, 0.0
  %v182 = vpack.c.bf16 %v181, %v181
  %v183 = vld [vmem:[%s3] sm:$0xf]
  %v184 = vld [vmem:[%s3 + $0x4] sm:$0xf]
  %v185 = vld [vmem:[%s3 + $0x8] sm:$0xf]
  %v186 = vld [vmem:[%s3 + $0xc] sm:$0xf]
  %v187 = vlaneseq
  %v188 = vshrl.u32 %v187, 7
  %v189 = vsub.s32 2, %v188
  %v190 = vrot.slane %v21, %v189
  %v195 = vunpack.c.l.b16 %v183
  %v196 = vunpack.c.l.b16 %v184
  %v197 = vunpack.c.l.b16 %v185
  %v198 = vunpack.c.l.b16 %v186
  %v199 = vpack.c.b16 %v196, %v195
  %v200 = vpack.c.b16 %v198, %v197
  %v204 = vsel %vm137, %v182, 0
  %206 = vmatprep.subr.bf16.mxu0 0
  %207 = vmatpush1.bf16.msra.mxu0 %v199
  %208 = vmatprep.subr.bf16.mxu0 0
  %209 = vmatpush1.bf16.msra.mxu0 %v200
  %210 = vmatprep.subr.bf16.mxu0 0
  %211 = vmatpush1.bf16.msra.mxu0 0
  %212 = vmatprep.subr.bf16.mxu0 0
  %213 = vmatpush1.bf16.msra.mxu0 0
  %214 = vmatprep.subr.bf16.mxu0 0
  %215 = vmatpush1.bf16.msra.mxu0 0
  %216 = vmatprep.subr.bf16.mxu0 0
  %217 = vmatpush1.bf16.msra.mxu0 0
  %218 = vmatprep.subr.bf16.mxu0 0
  %219 = vmatpush1.bf16.msra.mxu0 0
  %220 = vmatprep.subr.bf16.mxu0 0
  %221 = vmatpush1.bf16.msra.mxu0 0
  %222 = vmatprep.subr.bf16.mxu0 0
  %223 = vmatpush1.bf16.msra.mxu0 0
  %224 = vmatprep.subr.bf16.mxu0 0
  %225 = vmatpush1.bf16.msra.mxu0 0
  %226 = vmatprep.subr.bf16.mxu0 0
  %227 = vmatpush1.bf16.msra.mxu0 0
  %228 = vmatprep.subr.bf16.mxu0 0
  %229 = vmatpush1.bf16.msra.mxu0 0
  %230 = vmatprep.subr.bf16.mxu0 0
  %231 = vmatpush1.bf16.msra.mxu0 0
  %232 = vmatprep.subr.bf16.mxu0 0
  %233 = vmatpush1.bf16.msra.mxu0 0
  %234 = vmatprep.subr.bf16.mxu0 0
  %235 = vmatpush1.bf16.msra.mxu0 0
  %236 = vmatprep.subr.bf16.mxu0 0
  %237 = vmatpush1.bf16.msra.mxu0 0
  %238 = vmatprep.mubr.bf16.mxu0 0
  %239 = vmatmul.mubr.bf16.gmra.mrb[0].mxu0 %v204
  %v240 = vpop.f32.mrb[0].mxu0
  %v241 = vadd.f32 %v190, %v240
  %v242 = vpop.f32.mrb[0].mxu0
  %v243 = vpop.f32.mrb[0].mxu0
  %v244 = vpop.f32.mrb[0].mxu0
  %245 = vdwg.mxu0
  %v246 = vmax.f32 %v241, 0.0
  %v247 = vadd.f32 %v115, %v246
  %v248 = vlaneseq
  %v249 = vshrl.u32 %v248, 7
  %v250 = vsub.s32 3, %v249
  %v251 = vrot.slane %v21, %v250
  %v252 = vmul.f32 %v247, %v251
  %v253 = vsel %vm137, %v252, 0.0
  %254 = vadd.xlane.f32.xlu0 %v253
  %v255 = vpop.xlane.xlu0 %254
  %v256 = vlaneseq
  %v257 = vshrl.u32 %v256, 7
  %v258 = vsub.s32 4, %v257
  %v259 = vrot.slane %v21, %v258
  %v260 = vadd.f32 %v255, %v259
  %v261 = vand.u32 2147483647, %v260
  %v262 = vsub.f32 0.0, %v261
  %v263 = vmul.f32 %v262, 1.442695
  %v264 = vpow.pop %v263
  %v265 = vadd.f32 %v264, 1.0
  %v266 = vrcp.pop %v265
  %v267 = vmul.f32 1.0, %v266
  %vm268 = vcmp.ge.f32.partialorder %v260, 0.0
  %v269 = vsub.f32 1.0, %v267
  %v270 = vsel %vm268, %v267, %v269
  %vm271 = vcmask 7168
  %272 = vst.msk [vmem:[%s5] sm:$0xff] %vm271, %v270
  // Predicated region
  $region22: #{prediction_forward.1} parent=0 // pred_check
    _
  $region23: #{prediction_forward.1} parent=0 // pred_check_branch
    %274 = sbr.rel (0) target = $region25
  $region24: #{prediction_forward.1} parent=0 // pred_region
    _
  $region25: #{prediction_forward.1} parent=0 // pred_fallthru
    _
  // Predicated region
  $region26: #{prediction_forward.1} parent=0 // pred_check
    _
  $region27: #{prediction_forward.1} parent=0 // pred_check_branch
    %276 = sbr.rel (0) target = $region29
  $region28: #{prediction_forward.1} parent=0 // pred_region
    _
  $region29: #{prediction_forward.1} parent=0 // pred_fallthru
    _

</llo_original>
